<compile_context>
chip_gen: v6e
topology: v6e:2x2x1
jax: 0.10.0
libtpu: 0.0.40
codegen_flags: <defaults>
</compile_context>

<pallas_src>
import functools

import jax
import jax.numpy as jnp
from jax import lax
from jax.experimental import pallas as pl
from jax.experimental.pallas import tpu as pltpu


def _round_up(x, m):
    return (x + m - 1) // m * m


def _qconv_kernel(w_ref, xp_ref, b_ref, out_ref, *, s_in, s_w, s_out, z_out):
    # w_ref : (OC_pad, K_pad) bf16, quantized & zero-point-subtracted.
    # xp_ref: (K_pad, TM)    bf16, quantized & zero-point-subtracted patches.
    # b_ref : (OC_pad, 1)    f32 bias.
    # Integer-valued bf16 operands -> exact products, f32 accumulation on MXU.
    acc = jnp.dot(w_ref[...], xp_ref[...], preferred_element_type=jnp.float32)
    # Scale back to float and add (float) bias (lane-broadcast of (OC,1)).
    y = acc * (s_in * s_w) + b_ref[...]
    # Requantize to the conv3d output qparams (torch defaults scale=1.0,
    # zp=0, quint8) and immediately dequantize.
    qo = jnp.clip(jnp.round(y * (1.0 / s_out)) + z_out, 0.0, 255.0)
    out_ref[...] = ((qo - z_out) * s_out).astype(out_ref.dtype)


def unpacked_quantized_conv3d(x, w, b, *,
                              s_in, z_in, s_w, z_w, s_out=1.0, z_out=0,
                              tm=512):
    """x: (N, C, D, H, W) f32; w: (OC, IC, kD, kH, kW) f32; b: (OC,) f32."""
    N, C, D, H, W = x.shape
    OC, IC, kD, kH, kW = w.shape
    assert IC == C
    oD, oH, oW = D - kD + 1, H - kH + 1, W - kW + 1
    K = C * kD * kH * kW
    P = oD * oH * oW
    M = N * P

    # ---- Quantize ONCE, before im2col (quint8 simulation, round-half-to-even
    # like torch), subtract zero-point and cast to bf16 (integers |v| <= 255
    # are exactly representable in bf16).
    qx = jnp.clip(jnp.round(x / s_in) + z_in, 0.0, 255.0)
    xz = (qx - z_in).astype(jnp.bfloat16)                    # (N, C, D, H, W)

    # Quantize weight (qint8 simulation), subtract zero-point; keep (OC, K).
    qw = jnp.clip(jnp.round(w / s_w) + z_w, -128.0, 127.0)
    wz = (qw - z_w).reshape(OC, K).astype(jnp.bfloat16)      # (OC, K)

    # ---- im2col (glue, plain JAX) on the already-quantized bf16 tensor.
    # Feature order = ic-major, then (kd, kh, kw) -- matches w.reshape(OC, K).
    patches = jnp.stack(
        [xz[:, :, kd:kd + oD, kh:kh + oH, kw:kw + oW]
         for kd in range(kD) for kh in range(kH) for kw in range(kW)],
        axis=2)                                  # (N, C, kD*kH*kW, oD, oH, oW)
    # Lay out as (K, M): only a cheap leading-axis swap, no K<->P transpose.
    patches = patches.reshape(N, K, P).transpose(1, 0, 2).reshape(K, M)

    # ---- Pad to lane/sublane-friendly shapes (zeros contribute nothing to
    # the dot product; padded rows/cols are sliced off afterwards).
    tm = min(tm, _round_up(M, 128))         # don't over-tile tiny problems
    tm = _round_up(tm, 128)                 # M is the lane dim now
    K_pad = _round_up(K, 128)
    OC_pad = _round_up(OC, 16)              # bf16 sublane packing
    M_pad = _round_up(M, tm)

    patches = jnp.pad(patches, ((0, K_pad - K), (0, M_pad - M)))   # (K_pad, M_pad)
    w_mat = jnp.pad(wz, ((0, OC_pad - OC), (0, K_pad - K)))        # (OC_pad, K_pad)
    b_col = jnp.pad(b.astype(jnp.float32), (0, OC_pad - OC)).reshape(OC_pad, 1)

    kernel = functools.partial(
        _qconv_kernel,
        s_in=float(s_in), s_w=float(s_w),
        s_out=float(s_out), z_out=float(z_out))

    grid = (M_pad // tm,)
    out_flat = pl.pallas_call(
        kernel,
        out_shape=jax.ShapeDtypeStruct((OC_pad, M_pad), jnp.float32),
        grid=grid,
        in_specs=[
            pl.BlockSpec((OC_pad, K_pad), lambda i: (0, 0)),   # weights (const)
            pl.BlockSpec((K_pad, tm), lambda i: (0, i)),       # patch tile
            pl.BlockSpec((OC_pad, 1), lambda i: (0, 0)),       # bias (const)
        ],
        out_specs=pl.BlockSpec((OC_pad, tm), lambda i: (0, i)),
        compiler_params=pltpu.CompilerParams(
            dimension_semantics=("parallel",)),
    )(w_mat, patches, b_col)

    # Strip padding, back to PyTorch NCDHW output layout.
    out_flat = out_flat[:OC, :M]                              # (OC, N*P)
    return out_flat.reshape(OC, N, oD, oH, oW).transpose(1, 0, 2, 3, 4)


def _reference(x, w, b, *, s_in, z_in, s_w, z_w, s_out=1.0, z_out=0):
    qx = jnp.clip(jnp.round(x / s_in) + z_in, 0.0, 255.0)
    qw = jnp.clip(jnp.round(w / s_w) + z_w, -128.0, 127.0)
    acc = lax.conv_general_dilated(
        qx - z_in, qw - z_w, window_strides=(1, 1, 1), padding="VALID",
        dimension_numbers=("NCDHW", "OIDHW", "NCDHW"))
    y = acc * (s_in * s_w) + b[None, :, None, None, None]
    qo = jnp.clip(jnp.round(y / s_out) + z_out, 0.0, 255.0)
    return (qo - z_out) * s_out


if __name__ == "__main__":
    # Deterministic quantization parameters (would come from the Quantize
    # modules passed into UnpackedConv3dModel.__init__).
    S_IN, Z_IN = 0.25, 2.0      # input: quint8
    S_W, Z_W = 0.1, 0.0         # weight: qint8
    S_OUT, Z_OUT = 1.0, 0.0     # conv3d output qparams (torch defaults)

    key = jax.random.PRNGKey(0)
    kx, kw, kb = jax.random.split(key, 3)
    N, C, D, H, W = 2, 4, 8, 8, 8
    OC, kD, kH, kW = 4, 3, 3, 3

    x = jax.random.uniform(kx, (N, C, D, H, W), jnp.float32, 0.0, 8.0)
    w = jax.random.uniform(kw, (OC, C, kD, kH, kW), jnp.float32, -1.0, 1.0)
    b = jax.random.uniform(kb, (OC,), jnp.float32, -1.0, 1.0)

    # tm=256 so the toy size (M = 2*6*6*6 = 432 -> padded 512) still exercises
    # a multi-step, pipelined grid.
    out = unpacked_quantized_conv3d(
        x, w, b, s_in=S_IN, z_in=Z_IN, s_w=S_W, z_w=Z_W,
        s_out=S_OUT, z_out=Z_OUT, tm=256)
    out = jax.block_until_ready(out)

    ref = _reference(x, w, b, s_in=S_IN, z_in=Z_IN, s_w=S_W, z_w=Z_W,
                     s_out=S_OUT, z_out=Z_OUT)
    assert out.shape == (N, OC, D - kD + 1, H - kH + 1, W - kW + 1)
    assert jnp.allclose(out, ref, atol=1e-5), "mismatch vs. reference"

    print("KERNEL_OK")
</pallas_src>

<mosaic_0001>
module attributes {stable_mosaic.version = 11 : i64} {
  func.func @_qconv_kernel(%arg0: i32, %arg1: memref<16x128xbf16, #tpu.memory_space<vmem>>, %arg2: memref<128x256xbf16, #tpu.memory_space<vmem>>, %arg3: memref<16x1xf32, #tpu.memory_space<vmem>>, %arg4: memref<16x256xf32, #tpu.memory_space<vmem>>) attributes {dimension_semantics = [#tpu.dimension_semantics<parallel>], iteration_bounds = array<i64: 2>, scalar_prefetch = 0 : i64, scratch_operands = 0 : i64, tpu.core_type = #tpu.core_type<tc>, window_params = [{pipeline_mode = #tpu.pipeline_mode<synchronous>, transform_indices = @transform_0, window_bounds = array<i64: 16, 128>}, {transform_indices = @transform_1, window_bounds = array<i64: 128, 256>}, {pipeline_mode = #tpu.pipeline_mode<synchronous>, transform_indices = @transform_2, window_bounds = array<i64: 16, 1>}, {transform_indices = @transform_3, window_bounds = array<i64: 16, 256>}]} {
    %c0 = arith.constant 0 : index
    %c0_0 = arith.constant 0 : index
    %0 = vector.load %arg1[%c0, %c0_0] : memref<16x128xbf16, #tpu.memory_space<vmem>>, vector<16x128xbf16>
    %c0_1 = arith.constant 0 : index
    %c0_2 = arith.constant 0 : index
    %1 = vector.load %arg2[%c0_1, %c0_2] : memref<128x256xbf16, #tpu.memory_space<vmem>>, vector<128x256xbf16>
    %cst = arith.constant dense<0.000000e+00> : vector<16x256xf32>
    %2 = tpu.matmul %0, %1, %cst {dimension_numbers = #tpu.dot_dimension_numbers<[1], [0], [0], [1], [0, 0, 1, 1], [], []>} : vector<16x128xbf16>, vector<128x256xbf16>, vector<16x256xf32> -> vector<16x256xf32>
    %cst_3 = arith.constant 2.500000e-02 : f32
    %3 = vector.broadcast %cst_3 : f32 to vector<16x256xf32>
    %4 = arith.mulf %2, %3 : vector<16x256xf32>
    %c0_4 = arith.constant 0 : index
    %c0_5 = arith.constant 0 : index
    %5 = vector.load %arg3[%c0_4, %c0_5] : memref<16x1xf32, #tpu.memory_space<vmem>>, vector<16x1xf32>
    %6 = vector.broadcast %5 : vector<16x1xf32> to vector<16x256xf32>
    %7 = arith.addf %4, %6 : vector<16x256xf32>
    %cst_6 = arith.constant 1.000000e+00 : f32
    %8 = vector.broadcast %cst_6 : f32 to vector<16x256xf32>
    %9 = arith.mulf %7, %8 : vector<16x256xf32>
    %10 = math.roundeven %9 : vector<16x256xf32>
    %cst_7 = arith.constant 0.000000e+00 : f32
    %11 = vector.broadcast %cst_7 : f32 to vector<16x256xf32>
    %12 = arith.addf %10, %11 : vector<16x256xf32>
    %cst_8 = arith.constant 0.000000e+00 : f32
    %cst_9 = arith.constant 2.550000e+02 : f32
    %13 = vector.broadcast %cst_8 : f32 to vector<16x256xf32>
    %14 = arith.maximumf %13, %12 : vector<16x256xf32>
    %15 = vector.broadcast %cst_9 : f32 to vector<16x256xf32>
    %16 = arith.minimumf %15, %14 : vector<16x256xf32>
    %cst_10 = arith.constant 0.000000e+00 : f32
    %17 = vector.broadcast %cst_10 : f32 to vector<16x256xf32>
    %18 = arith.subf %16, %17 : vector<16x256xf32>
    %cst_11 = arith.constant 1.000000e+00 : f32
    %19 = vector.broadcast %cst_11 : f32 to vector<16x256xf32>
    %20 = arith.mulf %18, %19 : vector<16x256xf32>
    %c0_12 = arith.constant 0 : index
    %c0_13 = arith.constant 0 : index
    %21 = vector.load %arg4[%c0_12, %c0_13] : memref<16x256xf32, #tpu.memory_space<vmem>>, vector<16x256xf32>
    tpu.vector_store %arg4[%c0_12, %c0_13], %20 {strides = array<i32>} : memref<16x256xf32, #tpu.memory_space<vmem>>, vector<16x256xf32>,
    return
  }
  func.func @transform_0(%arg0: i32) -> (i32, i32) {
    %c0_i32 = arith.constant 0 : i32
    %c0_i32_0 = arith.constant 0 : i32
    %c0_i32_1 = arith.constant 0 : i32
    return %c0_i32, %c0_i32_0 : i32, i32
  }
  func.func @transform_1(%arg0: i32) -> (i32, i32) {
    %c0_i32 = arith.constant 0 : i32
    %c0_i32_0 = arith.constant 0 : i32
    return %c0_i32, %arg0 : i32, i32
  }
  func.func @transform_2(%arg0: i32) -> (i32, i32) {
    %c0_i32 = arith.constant 0 : i32
    %c0_i32_0 = arith.constant 0 : i32
    %c0_i32_1 = arith.constant 0 : i32
    return %c0_i32, %c0_i32_0 : i32, i32
  }
  func.func @transform_3(%arg0: i32) -> (i32, i32) {
    %c0_i32 = arith.constant 0 : i32
    %c0_i32_0 = arith.constant 0 : i32
    return %c0_i32, %arg0 : i32, i32
  }
}

</mosaic_0001>

<llo_original>
// kernel: tpu_custom_call.1
$region0: #{tpu_custom_call.1}
  #allocation0 [shape = 'u32[]', space=smem, size = 0x4, offset = 0x4, fixed_abs, tag = 'smem constant byte address 0x4 - core index']
  #allocation1 [shape = 'u32[144,128]{1,0:T(1,128)}', space=vmem, size = 0x12000, scoped, tag = 'internal scratch']
  %s0 = inlined_call_operand.vmem [shape: bf16[16,128], index: 0, kind: input, shape index: {}]
  %s1 = inlined_call_operand.hbm [shape: bf16[128,512], index: 1, kind: input, shape index: {}]
  %s2 = inlined_call_operand.vmem [shape: f32[16,1], index: 2, kind: input, shape index: {}]
  %s3 = inlined_call_operand.hbm [shape: f32[16,512], index: 3, kind: output, shape index: {}]
  %s4 = sld [smem:[#allocation0]]
  $region49: #{tpu_custom_call.1} parent=0
    _
  %s6 = ssub.s32 1, %s4
  %s7 = scalar_select 0, %s6, %s4
  $region1: #{tpu_custom_call.1} parent=0
    #allocation2 [shape = 'u8[131072]{0}', space=vmem, size = 0x20000, scoped, tag = 'input window, operand 1']
    #allocation3 [shape = 's32[2]{0}', space=sflag, size = 0x8, scoped, tag = 'scoped memory for tpu_custom_call.1']
    #allocation4 [shape = 's32[2]{0}', space=sflag, size = 0x8, scoped, tag = 'scoped memory for tpu_custom_call.1']
    #allocation5 [shape = 'u8[32768]{0}', space=vmem, size = 0x8000, scoped, tag = 'output window, operand 0']
    %8 = vsyncpa [#allocation3], 0
    %s9 = scalar_lea.sflag [#allocation3], 1
    %10 = vsyncpa %s9, 0
    %11 = vsyncpa [#allocation4], 0
    %s12 = scalar_lea.sflag [#allocation4], 1
    %13 = vsyncpa %s12, 0
    loop: start=0, step=1, limit=4
    $region2: #{tpu_custom_call.1} parent=1 // loop_pre_header
      _
    $region3: #{tpu_custom_call.1} parent=1 // loop_header
      %s15 = sphi 0, %s19
      %p16 = scmp.ge.s32.totalorder %s15, 4
      %s23 = sphi 0, %s23
      %s25 = sphi 0, %s23
      %s26 = sphi 0, %s25
      %s40 = sphi 0, %s26
      %s46 = sphi 0, %s48
      %s49 = sphi 0, %s46
      %s50 = sphi 0, %s49
      %s66 = sphi 0, %s50
      %s70 = sphi 0, %s70
      %s72 = sphi 0, %s70
      %s73 = sphi 0, %s72
      %s87 = sphi 0, %s73
      %s93 = sphi 0, %s95
      %s96 = sphi 0, %s93
      %s97 = sphi 0, %s96
      %s113 = sphi 0, %s97
    $region4: #{tpu_custom_call.1} parent=1 // loop_header_branch
      %18 = sbr.rel (%p16) target = $region8
    $region5: #{tpu_custom_call.1} parent=1 // loop_body
      %s20 = ssub.s32 %s15, 1
      %s21 = ssub.s32 %s15, 2
      %s22 = sadd.s32 %s15, 1
      %s24 = sadd.s32 %s23, 1
      %p27 = scmp.eq.s32.totalorder %s15, 1
      %p28 = scmp.ne.s32.totalorder %s23, %s25
      %p29 = scmp.eq.s32.totalorder %s15, 0
      %p30 = por %p28, %p29
      %p31 = scmp.ne.s32.totalorder %s23, %s25
      %p32 = scmp.eq.s32.totalorder %s20, 1
      %p33 = por %p31, %p32
      %p34 = scmp.ne.s32.totalorder %s25, %s26
      %p35 = scmp.eq.s32.totalorder %s20, 0
      %p36 = por %p34, %p35
      %p37 = scmp.ne.s32.totalorder %s25, %s26
      %p38 = scmp.eq.s32.totalorder %s21, 1
      %p39 = por %p37, %p38
      %p41 = scmp.ne.s32.totalorder %s26, %s40
      %p42 = scmp.eq.s32.totalorder %s21, 0
      %p43 = por %p41, %p42
      %s44 = ssub.s32 %s15, %s22
      %p45 = scmp.eq.s32.totalorder %s44, 0
      %s47 = sadd.s32 %s46, 1
      %s48 = scalar_select %p45, %s46, %s47
      %p51 = pneg %p45
      %p52 = scmp.eq.s32.totalorder %s15, 1
      %p53 = por %p51, %p52
      %p54 = scmp.ne.s32.totalorder %s46, %s49
      %p55 = scmp.eq.s32.totalorder %s15, 0
      %p56 = por %p54, %p55
      %p57 = scmp.ne.s32.totalorder %s46, %s49
      %p58 = scmp.eq.s32.totalorder %s20, 1
      %p59 = por %p57, %p58
      %p60 = scmp.ne.s32.totalorder %s49, %s50
      %p61 = scmp.eq.s32.totalorder %s20, 0
      %p62 = por %p60, %p61
      %p63 = scmp.ne.s32.totalorder %s49, %s50
      %p64 = scmp.eq.s32.totalorder %s21, 1
      %p65 = por %p63, %p64
      %p67 = scmp.ne.s32.totalorder %s50, %s66
      %p68 = scmp.eq.s32.totalorder %s21, 0
      %p69 = por %p67, %p68
      %s71 = sadd.s32 %s70, 1
      %p74 = scmp.eq.s32.totalorder %s15, 1
      %p75 = scmp.ne.s32.totalorder %s70, %s72
      %p76 = scmp.eq.s32.totalorder %s15, 0
      %p77 = por %p75, %p76
      %p78 = scmp.ne.s32.totalorder %s70, %s72
      %p79 = scmp.eq.s32.totalorder %s20, 1
      %p80 = por %p78, %p79
      %p81 = scmp.ne.s32.totalorder %s72, %s73
      %p82 = scmp.eq.s32.totalorder %s20, 0
      %p83 = por %p81, %p82
      %p84 = scmp.ne.s32.totalorder %s72, %s73
      %p85 = scmp.eq.s32.totalorder %s21, 1
      %p86 = por %p84, %p85
      %p88 = scmp.ne.s32.totalorder %s73, %s87
      %p89 = scmp.eq.s32.totalorder %s21, 0
      %p90 = por %p88, %p89
      %s91 = ssub.s32 %s15, %s22
      %p92 = scmp.eq.s32.totalorder %s91, 0
      %s94 = sadd.s32 %s93, 1
      %s95 = scalar_select %p92, %s93, %s94
      %p98 = pneg %p92
      %p99 = scmp.eq.s32.totalorder %s15, 1
      %p100 = por %p98, %p99
      %p101 = scmp.ne.s32.totalorder %s93, %s96
      %p102 = scmp.eq.s32.totalorder %s15, 0
      %p103 = por %p101, %p102
      %p104 = scmp.ne.s32.totalorder %s93, %s96
      %p105 = scmp.eq.s32.totalorder %s20, 1
      %p106 = por %p104, %p105
      %p107 = scmp.ne.s32.totalorder %s96, %s97
      %p108 = scmp.eq.s32.totalorder %s20, 0
      %p109 = por %p107, %p108
      %p110 = scmp.ne.s32.totalorder %s96, %s97
      %p111 = scmp.eq.s32.totalorder %s21, 1
      %p112 = por %p110, %p111
      %p114 = scmp.ne.s32.totalorder %s97, %s113
      %p115 = scmp.eq.s32.totalorder %s21, 0
      %p116 = por %p114, %p115
      %p117 = scmp.le.s32.totalorder 1, %s15
      %p118 = scmp.lt.s32.totalorder %s15, 3
      %p119 = pnand %p117, %p118
      %p120 = pneg %p119
      // Predicated region
      $region9: #{tpu_custom_call.1} parent=5 // pred_check
        _
      $region10: #{tpu_custom_call.1} parent=5 // pred_check_branch
        %122 = sbr.rel (%p119) target = $region12
      $region11: #{tpu_custom_call.1} parent=5 // pred_region
        %s123 = ssub.s32 %s15, 1
        // Predicated region
        $region13: #{tpu_custom_call.1} parent=11 // pred_check
          %p124 = pneg %p36
        $region14: #{tpu_custom_call.1} parent=11 // pred_check_branch
          %126 = sbr.rel (%p124) target = $region16
        $region15: #{tpu_custom_call.1} parent=11 // pred_region
          _
        $region16: #{tpu_custom_call.1} parent=11 // pred_fallthru
          _
        // Predicated region
        $region17: #{tpu_custom_call.1} parent=11 // pred_check
          %p127 = pneg %p83
        $region18: #{tpu_custom_call.1} parent=11 // pred_check_branch
          %129 = sbr.rel (%p127) target = $region20
        $region19: #{tpu_custom_call.1} parent=11 // pred_region
          _
        $region20: #{tpu_custom_call.1} parent=11 // pred_fallthru
          _
      $region12: #{tpu_custom_call.1} parent=5 // pred_fallthru
        _
      %p130 = scmp.lt.s32.totalorder %s15, 2
      // Predicated region
      $region21: #{tpu_custom_call.1} parent=5 // pred_check
        %p131 = pneg %p130
      $region22: #{tpu_custom_call.1} parent=5 // pred_check_branch
        %133 = sbr.rel (%p131) target = $region24
      $region23: #{tpu_custom_call.1} parent=5 // pred_region
        // Predicated region
        $region25: #{tpu_custom_call.1} parent=23 // pred_check
          %p134 = pneg %p56
        $region26: #{tpu_custom_call.1} parent=23 // pred_check_branch
          %136 = sbr.rel (%p134) target = $region28
        $region27: #{tpu_custom_call.1} parent=23 // pred_region
          %s137 = sand.u32 %s46, 1
          %s138 = scalar_lea.sflag [#allocation3], %s137
          %s139 = sand.u32 %s46, 1
          %s140 = smul.addr %s139, 128
          %s141 = scalar_lea.vmem [#allocation2], %s140
          %s142 = smul.u32 2, %s15
          %s144 = ssub.s32 2048, 2048
          %145 = vsyncadd %s138, %s144
          %s146 = smul.addr %s142, 64
          %s147 = scalar_lea.hbm %s1, %s146
          %s148 = sshll.u32 %s141, 4
          %s149 = int_to_ptr.vmem [resolvable:$true] %s148
          %154 = dma.hbm_to_vmem [thread:$0]  %s147, 2048, %s149, %s138, 256, 128, 8
        $region28: #{tpu_custom_call.1} parent=23 // pred_fallthru
          _
      $region24: #{tpu_custom_call.1} parent=5 // pred_fallthru
        _
      %p155 = scmp.le.s32.totalorder 1, %s15
      %p156 = scmp.lt.s32.totalorder %s15, 3
      %p157 = pnand %p155, %p156
      %p158 = pneg %p157
      // Predicated region
      $region29: #{tpu_custom_call.1} parent=5 // pred_check
        _
      $region30: #{tpu_custom_call.1} parent=5 // pred_check_branch
        %160 = sbr.rel (%p157) target = $region32
      $region31: #{tpu_custom_call.1} parent=5 // pred_region
        %s161 = ssub.s32 %s15, 1
        %s162 = sand.u32 %s49, 1
        %s163 = scalar_lea.sflag [#allocation3], %s162
        %s164 = sand.u32 %s49, 1
        %s165 = smul.addr %s164, 128
        %s166 = scalar_lea.vmem [#allocation2], %s165
        // Predicated region
        $region33: #{tpu_custom_call.1} parent=31 // pred_check
          %p167 = pneg %p62
        $region34: #{tpu_custom_call.1} parent=31 // pred_check_branch
          %169 = sbr.rel (%p167) target = $region36
        $region35: #{tpu_custom_call.1} parent=31 // pred_region
          %170 = dma.done %s163, 2048
        $region36: #{tpu_custom_call.1} parent=31 // pred_fallthru
          _
        %p171 = pneg %p36
        %p172 = pneg %p33
        %s173 = sand.u32 %s49, 1
        %s174 = scalar_lea.sflag [#allocation3], %s173
        %s175 = sand.u32 %s49, 1
        %s176 = smul.addr %s175, 128
        %s177 = scalar_lea.vmem [#allocation2], %s176
        %p178 = pneg %p62
        %p179 = pneg %p59
        %p180 = pneg %p83
        %p181 = pneg %p80
        %p182 = pneg %p109
        %p183 = pneg %p106
        %s184 = sand.u32 %s96, 1
        %s185 = scalar_lea.sflag [#allocation4], %s184
        %s186 = sand.u32 %s96, 1
        %s187 = smul.addr %s186, 32
        %s188 = scalar_lea.vmem [#allocation5], %s187
        %s189 = smul.u32 2, %s20
        %s190 = smul.u32 2, %s20
        %v192 = vld [vmem:[%s0] sm:$0xf]
        %v193 = vld [vmem:[%s0 + $0x4] sm:$0xf]
        %v194 = vld [vmem:[%s166] sm:$0xff]
        %v195 = vld [vmem:[%s166 + $0x8] sm:$0xff]
        %v196 = vld [vmem:[%s166 + $0x10] sm:$0xff]
        %v197 = vld [vmem:[%s166 + $0x18] sm:$0xff]
        %v198 = vld [vmem:[%s166 + $0x20] sm:$0xff]
        %v199 = vld [vmem:[%s166 + $0x28] sm:$0xff]
        %v200 = vld [vmem:[%s166 + $0x30] sm:$0xff]
        %v201 = vld [vmem:[%s166 + $0x38] sm:$0xff]
        %v202 = vld [vmem:[%s166 + $0x40] sm:$0xff]
        %v203 = vld [vmem:[%s166 + $0x48] sm:$0xff]
        %v204 = vld [vmem:[%s166 + $0x50] sm:$0xff]
        %v205 = vld [vmem:[%s166 + $0x58] sm:$0xff]
        %v206 = vld [vmem:[%s166 + $0x60] sm:$0xff]
        %v207 = vld [vmem:[%s166 + $0x68] sm:$0xff]
        %v208 = vld [vmem:[%s166 + $0x70] sm:$0xff]
        %v209 = vld [vmem:[%s166 + $0x78] sm:$0xff]
        %v212 = vunpack.c.l.b16 %v192
        %v213 = vunpack.c.l.b16 %v193
        %v214 = vpack.c.b16 %v213, %v212
        %v232 = vunpack.c.l.b16 %v194
        %v233 = vunpack.c.h.b16 %v194
        %v234 = vunpack.c.l.b16 %v195
        %v235 = vunpack.c.h.b16 %v195
        %v236 = vunpack.c.l.b16 %v196
        %v237 = vunpack.c.h.b16 %v196
        %v238 = vunpack.c.l.b16 %v197
        %v239 = vunpack.c.h.b16 %v197
        %v240 = vunpack.c.l.b16 %v198
        %v241 = vunpack.c.h.b16 %v198
        %v242 = vunpack.c.l.b16 %v199
        %v243 = vunpack.c.h.b16 %v199
        %v244 = vunpack.c.l.b16 %v200
        %v245 = vunpack.c.h.b16 %v200
        %v246 = vunpack.c.l.b16 %v201
        %v247 = vunpack.c.h.b16 %v201
        %v248 = vunpack.c.l.b16 %v202
        %v249 = vunpack.c.h.b16 %v202
        %v250 = vunpack.c.l.b16 %v203
        %v251 = vunpack.c.h.b16 %v203
        %v252 = vunpack.c.l.b16 %v204
        %v253 = vunpack.c.h.b16 %v204
        %v254 = vunpack.c.l.b16 %v205
        %v255 = vunpack.c.h.b16 %v205
        %v256 = vunpack.c.l.b16 %v206
        %v257 = vunpack.c.h.b16 %v206
        %v258 = vunpack.c.l.b16 %v207
        %v259 = vunpack.c.h.b16 %v207
        %v260 = vunpack.c.l.b16 %v208
        %v261 = vunpack.c.h.b16 %v208
        %v262 = vunpack.c.l.b16 %v209
        %v263 = vunpack.c.h.b16 %v209
        %v264 = vpack.c.b16 %v234, %v232
        %v265 = vpack.c.b16 %v235, %v233
        %v266 = vpack.c.b16 %v238, %v236
        %v267 = vpack.c.b16 %v239, %v237
        %v268 = vpack.c.b16 %v242, %v240
        %v269 = vpack.c.b16 %v243, %v241
        %v270 = vpack.c.b16 %v246, %v244
        %v271 = vpack.c.b16 %v247, %v245
        %v272 = vpack.c.b16 %v250, %v248
        %v273 = vpack.c.b16 %v251, %v249
        %v274 = vpack.c.b16 %v254, %v252
        %v275 = vpack.c.b16 %v255, %v253
        %v276 = vpack.c.b16 %v258, %v256
        %v277 = vpack.c.b16 %v259, %v257
        %v278 = vpack.c.b16 %v262, %v260
        %v279 = vpack.c.b16 %v263, %v261
        %296 = vmatprep.subr.bf16.mxu0 %v279
        %297 = vmatpush1.bf16.msra.mxu0 %v278
        %298 = vmatprep.subr.bf16.mxu0 %v277
        %299 = vmatpush1.bf16.msra.mxu0 %v276
        %300 = vmatprep.subr.bf16.mxu0 %v275
        %301 = vmatpush1.bf16.msra.mxu0 %v274
        %302 = vmatprep.subr.bf16.mxu0 %v273
        %303 = vmatpush1.bf16.msra.mxu0 %v272
        %304 = vmatprep.subr.bf16.mxu0 %v271
        %305 = vmatpush1.bf16.msra.mxu0 %v270
        %306 = vmatprep.subr.bf16.mxu0 %v269
        %307 = vmatpush1.bf16.msra.mxu0 %v268
        %308 = vmatprep.subr.bf16.mxu0 %v267
        %309 = vmatpush1.bf16.msra.mxu0 %v266
        %310 = vmatprep.subr.bf16.mxu0 %v265
        %311 = vmatpush1.bf16.msra.mxu0 %v264
        %312 = vmatprep.subr.bf16.mxu0 0
        %313 = vmatpush2.bf16.msra.mxu0 0
        %314 = vmatprep.subr.bf16.mxu0 0
        %315 = vmatpush2.bf16.msra.mxu0 0
        %316 = vmatprep.subr.bf16.mxu0 0
        %317 = vmatpush2.bf16.msra.mxu0 0
        %318 = vmatprep.subr.bf16.mxu0 0
        %319 = vmatpush2.bf16.msra.mxu0 0
        %320 = vmatprep.subr.bf16.mxu0 0
        %321 = vmatpush2.bf16.msra.mxu0 0
        %322 = vmatprep.subr.bf16.mxu0 0
        %323 = vmatpush2.bf16.msra.mxu0 0
        %324 = vmatprep.subr.bf16.mxu0 0
        %325 = vmatpush2.bf16.msra.mxu0 0
        %326 = vmatprep.subr.bf16.mxu0 0
        %327 = vmatpush2.bf16.msra.mxu0 0
        %328 = vmatprep.mubr.bf16.mxu0 0
        %329 = vmatmul.mubr.bf16.gmra.mxu0 %v214
        %v330 = vpop.f32.mrf.mxu0
        %v331 = vadd.f32 0.0, %v330
        %v332 = vpop.f32.mrf.mxu0
        %v333 = vadd.f32 0.0, %v332
        %v334 = vpop.f32.mrf.mxu0
        %v335 = vadd.f32 0.0, %v334
        %v336 = vpop.f32.mrf.mxu0
        %v337 = vadd.f32 0.0, %v336
        %338 = vdwg.mxu0
        %v339 = vmul.f32 %v331, 0.025
        %v340 = vmul.f32 %v333, 0.025
        %v341 = vmul.f32 %v335, 0.025
        %v342 = vmul.f32 %v337, 0.025
        %v343 = vld [vmem:[%s2] sm:$0xff]
        %v344 = vld [vmem:[%s2 + $0x8] sm:$0xff]
        %346 = vset.pattern.permute.xlu0 0
        %347 = vperm.xlu0 %346, %v343
        %v348 = vpop.permute.xlu0 %347
        %351 = vset.pattern.permute.xlu0 0
        %352 = vperm.xlu0 %351, %v344
        %v353 = vpop.permute.xlu0 %352
        %v355 = vadd.f32 %v339, %v348
        %v356 = vadd.f32 %v340, %v348
        %v357 = vadd.f32 %v341, %v353
        %v358 = vadd.f32 %v342, %v353
        %v359 = vround.ne.pseudo %v355
        %v360 = vround.ne.pseudo %v356
        %v361 = vround.ne.pseudo %v357
        %v362 = vround.ne.pseudo %v358
        %v363 = vadd.f32 %v359, 0.0
        %v364 = vadd.f32 %v360, 0.0
        %v365 = vadd.f32 %v361, 0.0
        %v366 = vadd.f32 %v362, 0.0
        %v367 = vmax.f32 %v363, 0.0
        %v368 = vmax.f32 %v364, 0.0
        %v369 = vmax.f32 %v365, 0.0
        %v370 = vmax.f32 %v366, 0.0
        %v371 = vmin.f32 %v367, 255.0
        %v372 = vmin.f32 %v368, 255.0
        %v373 = vmin.f32 %v369, 255.0
        %v374 = vmin.f32 %v370, 255.0
        %375 = vst [vmem:[%s188] sm:$0xff] %v371
        %376 = vst [vmem:[%s188 + $0x8] sm:$0xff] %v372
        %377 = vst [vmem:[%s188 + $0x10] sm:$0xff] %v373
        %378 = vst [vmem:[%s188 + $0x18] sm:$0xff] %v374
        %s379 = sand.u32 %s96, 1
        %s380 = scalar_lea.sflag [#allocation4], %s379
        %s381 = sand.u32 %s96, 1
        %s382 = smul.addr %s381, 32
        %s383 = scalar_lea.vmem [#allocation5], %s382
        // Predicated region
        $region37: #{tpu_custom_call.1} parent=31 // pred_check
          %p384 = pneg %p106
        $region38: #{tpu_custom_call.1} parent=31 // pred_check_branch
          %386 = sbr.rel (%p384) target = $region40
        $region39: #{tpu_custom_call.1} parent=31 // pred_region
          %s387 = smul.u32 2, %s20
          %s389 = ssub.s32 512, 512
          %390 = vsyncadd %s380, %s389
          %s391 = smul.addr %s387, 128
          %s392 = scalar_lea.hbm %s3, %s391
          %s393 = sshll.u32 %s383, 4
          %s394 = int_to_ptr.vmem [resolvable:$true] %s393
          %399 = dma.vmem_to_hbm [thread:$0]  %s394, 512, %s392, %s380, 256, 512, 16
        $region40: #{tpu_custom_call.1} parent=31 // pred_fallthru
          _
      $region32: #{tpu_custom_call.1} parent=5 // pred_fallthru
        _
      %p400 = scmp.le.s32.totalorder 2, %s15
      // Predicated region
      $region41: #{tpu_custom_call.1} parent=5 // pred_check
        %p401 = pneg %p400
      $region42: #{tpu_custom_call.1} parent=5 // pred_check_branch
        %403 = sbr.rel (%p401) target = $region44
      $region43: #{tpu_custom_call.1} parent=5 // pred_region
        %s404 = ssub.s32 %s15, 2
        // Predicated region
        $region45: #{tpu_custom_call.1} parent=43 // pred_check
          %p405 = pneg %p112
        $region46: #{tpu_custom_call.1} parent=43 // pred_check_branch
          %407 = sbr.rel (%p405) target = $region48
        $region47: #{tpu_custom_call.1} parent=43 // pred_region
          %s408 = sand.u32 %s97, 1
          %s409 = scalar_lea.sflag [#allocation4], %s408
          %s410 = sand.u32 %s97, 1
          %s411 = smul.addr %s410, 32
          %s412 = scalar_lea.vmem [#allocation5], %s411
          %413 = dma.done %s409, 512
        $region48: #{tpu_custom_call.1} parent=43 // pred_fallthru
          _
      $region44: #{tpu_custom_call.1} parent=5 // pred_fallthru
        _
    $region6: #{tpu_custom_call.1} parent=1 // loop_footer
      %s19 = sadd.s32 1, %s15
    $region7: #{tpu_custom_call.1} parent=1 // loop_footer_branch
      %14 = sbr.rel target = $region3
    $region8: #{tpu_custom_call.1} parent=1 // loop_exit
      _
    %414 = vsyncpa [#allocation3], 1
    %s415 = scalar_lea.sflag [#allocation3], 1
    %416 = vsyncpa %s415, 1
    %417 = vsyncpa [#allocation4], 1
    %s418 = scalar_lea.sflag [#allocation4], 1
    %419 = vsyncpa %s418, 1

</llo_original>
